<compile_context>
chip_gen: v7x
topology: tpu7x:2x2x1
jax: 0.10.0
libtpu: 0.0.40
codegen_flags: <defaults>
</compile_context>

<pallas_src>
import jax
import jax.numpy as jnp
from jax.experimental import pallas as pl
from jax.experimental.pallas import tpu as pltpu

T_DIM = 256
C_DIM = 128


def ca_net_kernel(t_ref, w_ref, b_ref, eps_ref, mu_ref, lv_ref, c_ref):
    # In-kernel bf16 cast (VPU, hidden under MXU) -> f32 accumulate on the MXU.
    t = t_ref[...].astype(jnp.bfloat16)
    x = jnp.dot(t, w_ref[...], preferred_element_type=jnp.float32)
    x = jnp.maximum(x + b_ref[...], 0.0)          # bias (broadcast) + ReLU, f32

    mu = x[:, :C_DIM]                             # split on a lane-128 boundary (vreg aligned)
    logvar = x[:, C_DIM:]
    mu_ref[...] = mu                              # unmasked full-lane stores (128 lanes)
    lv_ref[...] = logvar
    std = jnp.exp(0.5 * logvar)                   # EUP
    c_ref[...] = eps_ref[...] * std + mu          # reparametrize (VPU)


def _round_up(x, m):
    return ((x + m - 1) // m) * m


def ca_net_forward(text_embedding, weight_t, bias, eps, *, block_b=1024):
    """CA_NET forward.

    text_embedding: (B, T_DIM) f32
    weight_t:       (T_DIM, 2*C_DIM)  (nn.Linear weight, pre-transposed)
    bias:           (2*C_DIM,) f32
    eps:            (B, C_DIM) f32 standard normals (explicit for determinism)
    Returns (c_code, mu, logvar), each (B, C_DIM) f32.
    """
    B = text_embedding.shape[0]

    # One-time bf16 cast of the resident weight (128 KiB); ideally done once at
    # parameter setup rather than per call.
    w_bf16 = weight_t.astype(jnp.bfloat16)
    bias2d = bias.reshape(1, 2 * C_DIM).astype(jnp.float32)

    # Batch tile: chosen from VMEM / per-step-overhead only (op is mem-bound,
    # not MXU-bound). For B >= 16 keep >= 2 grid steps so the "parallel" batch
    # axis can shard across both TensorCores on v7x.
    tb = min(block_b, B)
    if B >= 16:
        tb = min(tb, _round_up(pl.cdiv(B, 2), 8))
    grid = (pl.cdiv(B, tb),)

    out_shapes = (
        jax.ShapeDtypeStruct((B, C_DIM), jnp.float32),  # mu
        jax.ShapeDtypeStruct((B, C_DIM), jnp.float32),  # logvar
        jax.ShapeDtypeStruct((B, C_DIM), jnp.float32),  # c_code
    )

    cost = pl.CostEstimate(
        flops=2 * B * T_DIM * 2 * C_DIM,
        transcendentals=B * C_DIM,
        bytes_accessed=(B * T_DIM * 4            # text (f32 read)
                        + T_DIM * 2 * C_DIM * 2  # weight (bf16, resident)
                        + 2 * C_DIM * 4          # bias
                        + B * C_DIM * 4          # eps
                        + 3 * B * C_DIM * 4),    # mu, logvar, c_code writes
    )

    mu, logvar, c_code = pl.pallas_call(
        ca_net_kernel,
        out_shape=out_shapes,
        grid=grid,
        in_specs=[
            pl.BlockSpec((tb, T_DIM), lambda i: (i, 0)),          # text tile (pipelined, f32)
            pl.BlockSpec((T_DIM, 2 * C_DIM), lambda i: (0, 0)),   # weight: resident across grid
            pl.BlockSpec((1, 2 * C_DIM), lambda i: (0, 0)),       # bias: resident
            pl.BlockSpec((tb, C_DIM), lambda i: (i, 0)),          # eps tile (pipelined)
        ],
        out_specs=(
            pl.BlockSpec((tb, C_DIM), lambda i: (i, 0)),          # mu
            pl.BlockSpec((tb, C_DIM), lambda i: (i, 0)),          # logvar
            pl.BlockSpec((tb, C_DIM), lambda i: (i, 0)),          # c_code
        ),
        compiler_params=pltpu.CompilerParams(
            # Batch steps are independent -> shardable across v7x's 2 TensorCores.
            dimension_semantics=("parallel",),
            # ~6-7 MiB at tb=1024 incl. double buffering; 16 MiB leaves headroom
            # and is well under v7x's 64 MiB per-TC VMEM.
            vmem_limit_bytes=16 * 1024 * 1024,
        ),
        cost_estimate=cost,
    )(text_embedding, w_bf16, bias2d, eps)

    return c_code, mu, logvar


if __name__ == "__main__":
    key = jax.random.PRNGKey(0)
    k_x, k_w, k_b, k_eps = jax.random.split(key, 4)

    B = 8  # small demo batch; sublane-aligned

    # Deterministic synthetic parameters (shapes from nn.Linear(256, 256)).
    # PyTorch weight is (out, in) = (2*C_DIM, T_DIM); we store its transpose.
    weight_t = jax.random.normal(k_w, (T_DIM, 2 * C_DIM), jnp.float32) * 0.05
    bias = jax.random.normal(k_b, (2 * C_DIM,), jnp.float32) * 0.05

    text_embedding = jax.random.normal(k_x, (B, T_DIM), jnp.float32)
    eps = jax.random.normal(k_eps, (B, C_DIM), jnp.float32)

    c_code, mu, logvar = ca_net_forward(text_embedding, weight_t, bias, eps)
    jax.block_until_ready((c_code, mu, logvar))

    # Pure-JAX reference with the same bf16-operand / f32-accumulate matmul.
    # NOTE: bf16 operands deviate from PyTorch's f32 Linear by ~1e-2 relative;
    # keep f32 operands in the kernel if downstream KL/conditioning needs it.
    x_ref = jnp.maximum(
        jnp.dot(text_embedding.astype(jnp.bfloat16),
                weight_t.astype(jnp.bfloat16),
                preferred_element_type=jnp.float32) + bias,
        0.0,
    )
    mu_ref = x_ref[:, :C_DIM]
    lv_ref = x_ref[:, C_DIM:]
    c_ref = eps * jnp.exp(0.5 * lv_ref) + mu_ref

    assert jnp.allclose(mu, mu_ref, atol=1e-2), "mu mismatch"
    assert jnp.allclose(logvar, lv_ref, atol=1e-2), "logvar mismatch"
    assert jnp.allclose(c_code, c_ref, atol=1e-2), "c_code mismatch"

    print("KERNEL_OK")
</pallas_src>

<mosaic_0001>
module attributes {stable_mosaic.version = 11 : i64} {
  func.func @ca_net_kernel(%arg0: i32, %arg1: memref<8x256xf32, #tpu.memory_space<vmem>>, %arg2: memref<256x256xbf16, #tpu.memory_space<vmem>>, %arg3: memref<1x256xf32, #tpu.memory_space<vmem>>, %arg4: memref<8x128xf32, #tpu.memory_space<vmem>>, %arg5: memref<8x128xf32, #tpu.memory_space<vmem>>, %arg6: memref<8x128xf32, #tpu.memory_space<vmem>>, %arg7: memref<8x128xf32, #tpu.memory_space<vmem>>) attributes {dimension_semantics = [#tpu.dimension_semantics<parallel>], iteration_bounds = array<i64: 1>, scalar_prefetch = 0 : i64, scratch_operands = 0 : i64, tpu.core_type = #tpu.core_type<tc>, window_params = [{transform_indices = @transform_0, window_bounds = array<i64: 8, 256>}, {pipeline_mode = #tpu.pipeline_mode<synchronous>, transform_indices = @transform_1, window_bounds = array<i64: 256, 256>}, {pipeline_mode = #tpu.pipeline_mode<synchronous>, transform_indices = @transform_2, window_bounds = array<i64: 1, 256>}, {transform_indices = @transform_3, window_bounds = array<i64: 8, 128>}, {transform_indices = @transform_4, window_bounds = array<i64: 8, 128>}, {transform_indices = @transform_5, window_bounds = array<i64: 8, 128>}, {transform_indices = @transform_6, window_bounds = array<i64: 8, 128>}]} {
    %c0 = arith.constant 0 : index
    %c0_0 = arith.constant 0 : index
    %0 = vector.load %arg1[%c0, %c0_0] : memref<8x256xf32, #tpu.memory_space<vmem>>, vector<8x256xf32>
    %1 = arith.truncf %0 : vector<8x256xf32> to vector<8x256xbf16>
    %c0_1 = arith.constant 0 : index
    %c0_2 = arith.constant 0 : index
    %2 = vector.load %arg2[%c0_1, %c0_2] : memref<256x256xbf16, #tpu.memory_space<vmem>>, vector<256x256xbf16>
    %cst = arith.constant dense<0.000000e+00> : vector<8x256xf32>
    %3 = tpu.matmul %1, %2, %cst {dimension_numbers = #tpu.dot_dimension_numbers<[1], [0], [0], [1], [0, 0, 1, 1], [], []>} : vector<8x256xbf16>, vector<256x256xbf16>, vector<8x256xf32> -> vector<8x256xf32>
    %c0_3 = arith.constant 0 : index
    %c0_4 = arith.constant 0 : index
    %4 = vector.load %arg3[%c0_3, %c0_4] : memref<1x256xf32, #tpu.memory_space<vmem>>, vector<1x256xf32>
    %5 = vector.broadcast %4 : vector<1x256xf32> to vector<8x256xf32>
    %6 = arith.addf %3, %5 : vector<8x256xf32>
    %cst_5 = arith.constant 0.000000e+00 : f32
    %7 = vector.broadcast %cst_5 : f32 to vector<8x256xf32>
    %8 = arith.maximumf %6, %7 : vector<8x256xf32>
    %9 = vector.extract_strided_slice %8 {offsets = [0, 0], sizes = [8, 128], strides = [1, 1]} : vector<8x256xf32> to vector<8x128xf32>
    %10 = vector.extract_strided_slice %8 {offsets = [0, 128], sizes = [8, 128], strides = [1, 1]} : vector<8x256xf32> to vector<8x128xf32>
    %c0_6 = arith.constant 0 : index
    %c0_7 = arith.constant 0 : index
    %11 = vector.load %arg5[%c0_6, %c0_7] : memref<8x128xf32, #tpu.memory_space<vmem>>, vector<8x128xf32>
    tpu.vector_store %arg5[%c0_6, %c0_7], %9 {strides = array<i32>} : memref<8x128xf32, #tpu.memory_space<vmem>>, vector<8x128xf32>,
    %c0_8 = arith.constant 0 : index
    %c0_9 = arith.constant 0 : index
    %12 = vector.load %arg6[%c0_8, %c0_9] : memref<8x128xf32, #tpu.memory_space<vmem>>, vector<8x128xf32>
    tpu.vector_store %arg6[%c0_8, %c0_9], %10 {strides = array<i32>} : memref<8x128xf32, #tpu.memory_space<vmem>>, vector<8x128xf32>,
    %cst_10 = arith.constant 5.000000e-01 : f32
    %13 = vector.broadcast %cst_10 : f32 to vector<8x128xf32>
    %14 = arith.mulf %13, %10 : vector<8x128xf32>
    %15 = math.exp %14 : vector<8x128xf32>
    %c0_11 = arith.constant 0 : index
    %c0_12 = arith.constant 0 : index
    %16 = vector.load %arg4[%c0_11, %c0_12] : memref<8x128xf32, #tpu.memory_space<vmem>>, vector<8x128xf32>
    %17 = arith.mulf %16, %15 : vector<8x128xf32>
    %18 = arith.addf %17, %9 : vector<8x128xf32>
    %c0_13 = arith.constant 0 : index
    %c0_14 = arith.constant 0 : index
    %19 = vector.load %arg7[%c0_13, %c0_14] : memref<8x128xf32, #tpu.memory_space<vmem>>, vector<8x128xf32>
    tpu.vector_store %arg7[%c0_13, %c0_14], %18 {strides = array<i32>} : memref<8x128xf32, #tpu.memory_space<vmem>>, vector<8x128xf32>,
    return
  }
  func.func @transform_0(%arg0: i32) -> (i32, i32) {
    %c0_i32 = arith.constant 0 : i32
    %c0_i32_0 = arith.constant 0 : i32
    return %arg0, %c0_i32 : i32, i32
  }
  func.func @transform_1(%arg0: i32) -> (i32, i32) {
    %c0_i32 = arith.constant 0 : i32
    %c0_i32_0 = arith.constant 0 : i32
    %c0_i32_1 = arith.constant 0 : i32
    return %c0_i32, %c0_i32_0 : i32, i32
  }
  func.func @transform_2(%arg0: i32) -> (i32, i32) {
    %c0_i32 = arith.constant 0 : i32
    %c0_i32_0 = arith.constant 0 : i32
    %c0_i32_1 = arith.constant 0 : i32
    return %c0_i32, %c0_i32_0 : i32, i32
  }
  func.func @transform_3(%arg0: i32) -> (i32, i32) {
    %c0_i32 = arith.constant 0 : i32
    %c0_i32_0 = arith.constant 0 : i32
    return %arg0, %c0_i32 : i32, i32
  }
  func.func @transform_4(%arg0: i32) -> (i32, i32) {
    %c0_i32 = arith.constant 0 : i32
    %c0_i32_0 = arith.constant 0 : i32
    return %arg0, %c0_i32 : i32, i32
  }
  func.func @transform_5(%arg0: i32) -> (i32, i32) {
    %c0_i32 = arith.constant 0 : i32
    %c0_i32_0 = arith.constant 0 : i32
    return %arg0, %c0_i32 : i32, i32
  }
  func.func @transform_6(%arg0: i32) -> (i32, i32) {
    %c0_i32 = arith.constant 0 : i32
    %c0_i32_0 = arith.constant 0 : i32
    return %arg0, %c0_i32 : i32, i32
  }
}

</mosaic_0001>

<llo_original>
// kernel: tpu_custom_call.1
$region0: #{tpu_custom_call.1}
  #allocation0 [shape = 'u32[]', space=smem, size = 0x4, offset = 0x4, fixed_abs, tag = 'smem constant byte address 0x4 - core index']
  #allocation1 [shape = 'u32[144,128]{1,0:T(1,128)}', space=vmem, size = 0x12000, scoped, tag = 'internal scratch']
  %s0 = inlined_call_operand.hbm [shape: f32[8,256], index: 0, kind: input, shape index: {}]
  %s1 = inlined_call_operand.hbm [shape: bf16[256,256], index: 1, kind: input, shape index: {}]
  %s2 = inlined_call_operand.vmem [shape: f32[1,256], index: 2, kind: input, shape index: {}]
  %s3 = inlined_call_operand.vmem [shape: f32[8,128], index: 3, kind: input, shape index: {}]
  %s4 = inlined_call_operand.hbm [shape: f32[8,128], index: 4, kind: output, shape index: {0}]
  %s5 = inlined_call_operand.hbm [shape: f32[8,128], index: 5, kind: output, shape index: {1}]
  %s6 = inlined_call_operand.hbm [shape: f32[8,128], index: 6, kind: output, shape index: {2}]
  %7 = xla_tuple %s4, %s5, %s6
  %s8 = sld [smem:[#allocation0]]
  $region50: #{tpu_custom_call.1} parent=0
    _
  %s10 = ssub.s32 1, %s8
  %s11 = scalar_select 0, %s10, %s8
  $region1: #{tpu_custom_call.1} parent=0
    #allocation2 [shape = 'u8[8192]{0}', space=vmem, size = 0x2000, scoped, tag = 'input window, operand 0, single buffered']
    #allocation3 [shape = 's32[1]{0}', space=sflag, size = 0x4, scoped, tag = 'scoped memory for tpu_custom_call.1']
    #allocation4 [shape = 's32[1]{0}', space=sflag, size = 0x4, scoped, tag = 'scoped memory for tpu_custom_call.1']
    #allocation5 [shape = 'u8[131072]{0}', space=vmem, size = 0x20000, scoped, tag = 'input window, operand 1, single buffered']
    #allocation6 [shape = 's32[1]{0}', space=sflag, size = 0x4, scoped, tag = 'scoped memory for tpu_custom_call.1']
    #allocation7 [shape = 'u8[4096]{0}', space=vmem, size = 0x1000, scoped, tag = 'output window, operand 0, single buffered']
    #allocation8 [shape = 'u8[4096]{0}', space=vmem, size = 0x1000, scoped, tag = 'output window, operand 1, single buffered']
    #allocation9 [shape = 's32[1]{0}', space=sflag, size = 0x4, scoped, tag = 'scoped memory for tpu_custom_call.1']
    #allocation10 [shape = 'u8[4096]{0}', space=vmem, size = 0x1000, scoped, tag = 'output window, operand 2, single buffered']
    %12 = vsyncpa [#allocation3], 0
    %13 = vsyncpa [#allocation6], 0
    %14 = vsyncpa [#allocation4], 0
    %15 = vsyncpa [#allocation9], 0
    // Predicated region
    $region2: #{tpu_custom_call.1} parent=1 // pred_check
      _
    $region3: #{tpu_custom_call.1} parent=1 // pred_check_branch
      %17 = sbr.rel (0) target = $region5
    $region4: #{tpu_custom_call.1} parent=1 // pred_region
      %s19 = ssub.s32 256, 256
      %20 = vsyncadd [#allocation3], %s19
      %s22 = sshll.u32 [#allocation2], 4
      %s23 = int_to_ptr.vmem [resolvable:$true] %s22
      %25 = dma.hbm_to_vmem [thread:$0]  %s0, 256, %s23, [#allocation3]
    $region5: #{tpu_custom_call.1} parent=1 // pred_fallthru
      _
    // Predicated region
    $region6: #{tpu_custom_call.1} parent=1 // pred_check
      _
    $region7: #{tpu_custom_call.1} parent=1 // pred_check_branch
      %27 = sbr.rel (0) target = $region9
    $region8: #{tpu_custom_call.1} parent=1 // pred_region
      %s29 = ssub.s32 4096, 4096
      %30 = vsyncadd [#allocation6], %s29
      %s31 = sshll.u32 [#allocation5], 4
      %s32 = int_to_ptr.vmem [resolvable:$true] %s31
      %37 = dma.hbm_to_vmem [thread:$0]  %s1, 4096, %s32, [#allocation6], 128, 128, 8
    $region9: #{tpu_custom_call.1} parent=1 // pred_fallthru
      _
    // Predicated region
    $region10: #{tpu_custom_call.1} parent=1 // pred_check
      _
    $region11: #{tpu_custom_call.1} parent=1 // pred_check_branch
      %39 = sbr.rel (0) target = $region13
    $region12: #{tpu_custom_call.1} parent=1 // pred_region
      _
    $region13: #{tpu_custom_call.1} parent=1 // pred_fallthru
      _
    // Predicated region
    $region14: #{tpu_custom_call.1} parent=1 // pred_check
      _
    $region15: #{tpu_custom_call.1} parent=1 // pred_check_branch
      %41 = sbr.rel (0) target = $region17
    $region16: #{tpu_custom_call.1} parent=1 // pred_region
      _
    $region17: #{tpu_custom_call.1} parent=1 // pred_fallthru
      _
    // Predicated region
    $region18: #{tpu_custom_call.1} parent=1 // pred_check
      _
    $region19: #{tpu_custom_call.1} parent=1 // pred_check_branch
      %43 = sbr.rel (0) target = $region21
    $region20: #{tpu_custom_call.1} parent=1 // pred_region
      %44 = dma.done [#allocation3], 256
    $region21: #{tpu_custom_call.1} parent=1 // pred_fallthru
      _
    // Predicated region
    $region22: #{tpu_custom_call.1} parent=1 // pred_check
      _
    $region23: #{tpu_custom_call.1} parent=1 // pred_check_branch
      %46 = sbr.rel (0) target = $region25
    $region24: #{tpu_custom_call.1} parent=1 // pred_region
      %47 = dma.done [#allocation6], 4096
    $region25: #{tpu_custom_call.1} parent=1 // pred_fallthru
      _
    %v48 = vld [vmem:[#allocation2] sm:$0xff]
    %v49 = vld [vmem:[#allocation2 + $0x8] sm:$0xff]
    %v50 = vpack.c.bf16 %v48, %v48
    %v51 = vpack.c.bf16 %v49, %v49
    %v52 = vld [vmem:[#allocation5] sm:$0xff]
    %v53 = vld [vmem:[#allocation5 + $0x8] sm:$0xff]
    %v54 = vld [vmem:[#allocation5 + $0x10] sm:$0xff]
    %v55 = vld [vmem:[#allocation5 + $0x18] sm:$0xff]
    %v56 = vld [vmem:[#allocation5 + $0x20] sm:$0xff]
    %v57 = vld [vmem:[#allocation5 + $0x28] sm:$0xff]
    %v58 = vld [vmem:[#allocation5 + $0x30] sm:$0xff]
    %v59 = vld [vmem:[#allocation5 + $0x38] sm:$0xff]
    %v60 = vld [vmem:[#allocation5 + $0x40] sm:$0xff]
    %v61 = vld [vmem:[#allocation5 + $0x48] sm:$0xff]
    %v62 = vld [vmem:[#allocation5 + $0x50] sm:$0xff]
    %v63 = vld [vmem:[#allocation5 + $0x58] sm:$0xff]
    %v64 = vld [vmem:[#allocation5 + $0x60] sm:$0xff]
    %v65 = vld [vmem:[#allocation5 + $0x68] sm:$0xff]
    %v66 = vld [vmem:[#allocation5 + $0x70] sm:$0xff]
    %v67 = vld [vmem:[#allocation5 + $0x78] sm:$0xff]
    %v68 = vld [vmem:[#allocation5 + $0x80] sm:$0xff]
    %v69 = vld [vmem:[#allocation5 + $0x88] sm:$0xff]
    %v70 = vld [vmem:[#allocation5 + $0x90] sm:$0xff]
    %v71 = vld [vmem:[#allocation5 + $0x98] sm:$0xff]
    %v72 = vld [vmem:[#allocation5 + $0xa0] sm:$0xff]
    %v73 = vld [vmem:[#allocation5 + $0xa8] sm:$0xff]
    %v74 = vld [vmem:[#allocation5 + $0xb0] sm:$0xff]
    %v75 = vld [vmem:[#allocation5 + $0xb8] sm:$0xff]
    %v76 = vld [vmem:[#allocation5 + $0xc0] sm:$0xff]
    %v77 = vld [vmem:[#allocation5 + $0xc8] sm:$0xff]
    %v78 = vld [vmem:[#allocation5 + $0xd0] sm:$0xff]
    %v79 = vld [vmem:[#allocation5 + $0xd8] sm:$0xff]
    %v80 = vld [vmem:[#allocation5 + $0xe0] sm:$0xff]
    %v81 = vld [vmem:[#allocation5 + $0xe8] sm:$0xff]
    %v82 = vld [vmem:[#allocation5 + $0xf0] sm:$0xff]
    %v83 = vld [vmem:[#allocation5 + $0xf8] sm:$0xff]
    %v84 = vld [vmem:[%s2] sm:$0x3]
    %v86 = vlaneseq
    %v87 = vshrl.u32 %v86, 7
    %v88 = vsub.s32 0, %v87
    %v89 = vrot.slane %v84, %v88
    %v90 = vlaneseq
    %v91 = vshrl.u32 %v90, 7
    %v92 = vsub.s32 1, %v91
    %v93 = vrot.slane %v84, %v92
    %v128 = vunpack.c.l.b16 %v52
    %v129 = vunpack.c.h.b16 %v52
    %v130 = vunpack.c.l.b16 %v53
    %v131 = vunpack.c.h.b16 %v53
    %v132 = vunpack.c.l.b16 %v54
    %v133 = vunpack.c.h.b16 %v54
    %v134 = vunpack.c.l.b16 %v55
    %v135 = vunpack.c.h.b16 %v55
    %v136 = vunpack.c.l.b16 %v56
    %v137 = vunpack.c.h.b16 %v56
    %v138 = vunpack.c.l.b16 %v57
    %v139 = vunpack.c.h.b16 %v57
    %v140 = vunpack.c.l.b16 %v58
    %v141 = vunpack.c.h.b16 %v58
    %v142 = vunpack.c.l.b16 %v59
    %v143 = vunpack.c.h.b16 %v59
    %v144 = vunpack.c.l.b16 %v60
    %v145 = vunpack.c.h.b16 %v60
    %v146 = vunpack.c.l.b16 %v61
    %v147 = vunpack.c.h.b16 %v61
    %v148 = vunpack.c.l.b16 %v62
    %v149 = vunpack.c.h.b16 %v62
    %v150 = vunpack.c.l.b16 %v63
    %v151 = vunpack.c.h.b16 %v63
    %v152 = vunpack.c.l.b16 %v64
    %v153 = vunpack.c.h.b16 %v64
    %v154 = vunpack.c.l.b16 %v65
    %v155 = vunpack.c.h.b16 %v65
    %v156 = vunpack.c.l.b16 %v66
    %v157 = vunpack.c.h.b16 %v66
    %v158 = vunpack.c.l.b16 %v67
    %v159 = vunpack.c.h.b16 %v67
    %v160 = vunpack.c.l.b16 %v68
    %v161 = vunpack.c.h.b16 %v68
    %v162 = vunpack.c.l.b16 %v69
    %v163 = vunpack.c.h.b16 %v69
    %v164 = vunpack.c.l.b16 %v70
    %v165 = vunpack.c.h.b16 %v70
    %v166 = vunpack.c.l.b16 %v71
    %v167 = vunpack.c.h.b16 %v71
    %v168 = vunpack.c.l.b16 %v72
    %v169 = vunpack.c.h.b16 %v72
    %v170 = vunpack.c.l.b16 %v73
    %v171 = vunpack.c.h.b16 %v73
    %v172 = vunpack.c.l.b16 %v74
    %v173 = vunpack.c.h.b16 %v74
    %v174 = vunpack.c.l.b16 %v75
    %v175 = vunpack.c.h.b16 %v75
    %v176 = vunpack.c.l.b16 %v76
    %v177 = vunpack.c.h.b16 %v76
    %v178 = vunpack.c.l.b16 %v77
    %v179 = vunpack.c.h.b16 %v77
    %v180 = vunpack.c.l.b16 %v78
    %v181 = vunpack.c.h.b16 %v78
    %v182 = vunpack.c.l.b16 %v79
    %v183 = vunpack.c.h.b16 %v79
    %v184 = vunpack.c.l.b16 %v80
    %v185 = vunpack.c.h.b16 %v80
    %v186 = vunpack.c.l.b16 %v81
    %v187 = vunpack.c.h.b16 %v81
    %v188 = vunpack.c.l.b16 %v82
    %v189 = vunpack.c.h.b16 %v82
    %v190 = vunpack.c.l.b16 %v83
    %v191 = vunpack.c.h.b16 %v83
    %v192 = vpack.c.b16 %v130, %v128
    %v193 = vpack.c.b16 %v131, %v129
    %v194 = vpack.c.b16 %v134, %v132
    %v195 = vpack.c.b16 %v135, %v133
    %v196 = vpack.c.b16 %v138, %v136
    %v197 = vpack.c.b16 %v139, %v137
    %v198 = vpack.c.b16 %v142, %v140
    %v199 = vpack.c.b16 %v143, %v141
    %v200 = vpack.c.b16 %v146, %v144
    %v201 = vpack.c.b16 %v147, %v145
    %v202 = vpack.c.b16 %v150, %v148
    %v203 = vpack.c.b16 %v151, %v149
    %v204 = vpack.c.b16 %v154, %v152
    %v205 = vpack.c.b16 %v155, %v153
    %v206 = vpack.c.b16 %v158, %v156
    %v207 = vpack.c.b16 %v159, %v157
    %v208 = vpack.c.b16 %v162, %v160
    %v209 = vpack.c.b16 %v163, %v161
    %v210 = vpack.c.b16 %v166, %v164
    %v211 = vpack.c.b16 %v167, %v165
    %v212 = vpack.c.b16 %v170, %v168
    %v213 = vpack.c.b16 %v171, %v169
    %v214 = vpack.c.b16 %v174, %v172
    %v215 = vpack.c.b16 %v175, %v173
    %v216 = vpack.c.b16 %v178, %v176
    %v217 = vpack.c.b16 %v179, %v177
    %v218 = vpack.c.b16 %v182, %v180
    %v219 = vpack.c.b16 %v183, %v181
    %v220 = vpack.c.b16 %v186, %v184
    %v221 = vpack.c.b16 %v187, %v185
    %v222 = vpack.c.b16 %v190, %v188
    %v223 = vpack.c.b16 %v191, %v189
    %256 = vmatprep.subr.bf16.mxu0 %v193
    %257 = vmatpush1.bf16.msra.mxu0 %v192
    %258 = vmatprep.subr.bf16.mxu0 %v195
    %259 = vmatpush1.bf16.msra.mxu0 %v194
    %260 = vmatprep.subr.bf16.mxu0 %v197
    %261 = vmatpush1.bf16.msra.mxu0 %v196
    %262 = vmatprep.subr.bf16.mxu0 %v199
    %263 = vmatpush1.bf16.msra.mxu0 %v198
    %264 = vmatprep.subr.bf16.mxu0 %v201
    %265 = vmatpush1.bf16.msra.mxu0 %v200
    %266 = vmatprep.subr.bf16.mxu0 %v203
    %267 = vmatpush1.bf16.msra.mxu0 %v202
    %268 = vmatprep.subr.bf16.mxu0 %v205
    %269 = vmatpush1.bf16.msra.mxu0 %v204
    %270 = vmatprep.subr.bf16.mxu0 %v207
    %271 = vmatpush1.bf16.msra.mxu0 %v206
    %272 = vmatprep.subr.bf16.mxu0 %v209
    %273 = vmatpush1.bf16.msra.mxu0 %v208
    %274 = vmatprep.subr.bf16.mxu0 %v211
    %275 = vmatpush1.bf16.msra.mxu0 %v210
    %276 = vmatprep.subr.bf16.mxu0 %v213
    %277 = vmatpush1.bf16.msra.mxu0 %v212
    %278 = vmatprep.subr.bf16.mxu0 %v215
    %279 = vmatpush1.bf16.msra.mxu0 %v214
    %280 = vmatprep.subr.bf16.mxu0 %v217
    %281 = vmatpush1.bf16.msra.mxu0 %v216
    %282 = vmatprep.subr.bf16.mxu0 %v219
    %283 = vmatpush1.bf16.msra.mxu0 %v218
    %284 = vmatprep.subr.bf16.mxu0 %v221
    %285 = vmatpush1.bf16.msra.mxu0 %v220
    %286 = vmatprep.subr.bf16.mxu0 %v223
    %287 = vmatpush1.bf16.msra.mxu0 %v222
    %288 = vmatprep.mubr.bf16.mxu0 %v51
    %289 = vmatmul.mubr.bf16.gmra.mrb[0].mxu0 %v50
    %v290 = vpop.f32.mrb[0].mxu0
    %v291 = vadd.f32 %v89, %v290
    %v292 = vpop.f32.mrb[0].mxu0
    %v293 = vadd.f32 %v93, %v292
    %v294 = vpop.f32.mrb[0].mxu0
    %v295 = vpop.f32.mrb[0].mxu0
    %296 = vdwg.mxu0
    %v297 = vmax.f32 %v291, 0.0
    %v298 = vmax.f32 %v293, 0.0
    %299 = vst [vmem:[#allocation7] sm:$0xff] %v297
    %300 = vst [vmem:[#allocation8] sm:$0xff] %v298
    %v301 = vmul.f32 %v298, 0.5
    %v302 = vmul.f32 %v301, 1.442695
    %v303 = vpow.pop %v302
    %v304 = vld [vmem:[%s3] sm:$0xff]
    %v305 = vmul.f32 %v304, %v303
    %v306 = vadd.f32 %v305, %v297
    %307 = vst [vmem:[#allocation10] sm:$0xff] %v306
    // Predicated region
    $region26: #{tpu_custom_call.1} parent=1 // pred_check
      _
    $region27: #{tpu_custom_call.1} parent=1 // pred_check_branch
      %309 = sbr.rel (0) target = $region29
    $region28: #{tpu_custom_call.1} parent=1 // pred_region
      %s311 = ssub.s32 128, 128
      %312 = vsyncadd [#allocation4], %s311
      %s314 = sshll.u32 [#allocation7], 4
      %s315 = int_to_ptr.vmem [resolvable:$true] %s314
      %317 = dma.vmem_to_hbm [thread:$0]  %s315, 128, %s4, [#allocation4]
    $region29: #{tpu_custom_call.1} parent=1 // pred_fallthru
      _
    // Predicated region
    $region30: #{tpu_custom_call.1} parent=1 // pred_check
      _
    $region31: #{tpu_custom_call.1} parent=1 // pred_check_branch
      %319 = sbr.rel (0) target = $region33
    $region32: #{tpu_custom_call.1} parent=1 // pred_region
      %s321 = ssub.s32 128, 128
      %322 = vsyncadd [#allocation9], %s321
      %s324 = sshll.u32 [#allocation8], 4
      %s325 = int_to_ptr.vmem [resolvable:$true] %s324
      %327 = dma.vmem_to_hbm [thread:$0]  %s325, 128, %s5, [#allocation9]
    $region33: #{tpu_custom_call.1} parent=1 // pred_fallthru
      _
    // Predicated region
    $region34: #{tpu_custom_call.1} parent=1 // pred_check
      _
    $region35: #{tpu_custom_call.1} parent=1 // pred_check_branch
      %329 = sbr.rel (0) target = $region37
    $region36: #{tpu_custom_call.1} parent=1 // pred_region
      %s331 = ssub.s32 128, 128
      %332 = vsyncadd [#allocation9], %s331
      %s334 = sshll.u32 [#allocation10], 4
      %s335 = int_to_ptr.vmem [resolvable:$true] %s334
      %337 = dma.vmem_to_hbm [thread:$0]  %s335, 128, %s6, [#allocation9]
    $region37: #{tpu_custom_call.1} parent=1 // pred_fallthru
      _
    // Predicated region
    $region38: #{tpu_custom_call.1} parent=1 // pred_check
      _
    $region39: #{tpu_custom_call.1} parent=1 // pred_check_branch
      %339 = sbr.rel (0) target = $region41
    $region40: #{tpu_custom_call.1} parent=1 // pred_region
      %340 = dma.done [#allocation4], 128
    $region41: #{tpu_custom_call.1} parent=1 // pred_fallthru
      _
    // Predicated region
    $region42: #{tpu_custom_call.1} parent=1 // pred_check
      _
    $region43: #{tpu_custom_call.1} parent=1 // pred_check_branch
      %342 = sbr.rel (0) target = $region45
    $region44: #{tpu_custom_call.1} parent=1 // pred_region
      %343 = dma.done [#allocation9], 128
    $region45: #{tpu_custom_call.1} parent=1 // pred_fallthru
      _
    // Predicated region
    $region46: #{tpu_custom_call.1} parent=1 // pred_check
      _
    $region47: #{tpu_custom_call.1} parent=1 // pred_check_branch
      %345 = sbr.rel (0) target = $region49
    $region48: #{tpu_custom_call.1} parent=1 // pred_region
      %346 = dma.done [#allocation9], 128
    $region49: #{tpu_custom_call.1} parent=1 // pred_fallthru
      _
    %347 = vsyncpa [#allocation3], 1
    %348 = vsyncpa [#allocation6], 1
    %349 = vsyncpa [#allocation4], 1
    %350 = vsyncpa [#allocation9], 1

</llo_original>
